<compile_context>
chip_gen: v7x
topology: tpu7x:2x2x1
jax: 0.10.0
libtpu: 0.0.40
codegen_flags: <defaults>
</compile_context>

<pallas_src>
import jax
import jax.numpy as jnp
from jax.experimental import pallas as pl
from jax.experimental.pallas import tpu as pltpu


def _round_up(x, m):
    return ((x + m - 1) // m) * m


def _loss_antonymy_kernel(s2_ref, a1_ref, scale_ref, out_ref):
    # (tb, D) lane-dense tiles; upcast so bf16 inputs accumulate in f32.
    diff = a1_ref[...].astype(jnp.float32) - s2_ref[...].astype(jnp.float32)
    sq_dist = jnp.sum(diff * diff, axis=-1, keepdims=True)     # (tb, 1) cross-lane reduce
    t = jnp.tanh(jnp.sqrt(sq_dist))                            # (tb, 1) EUP
    # Per-tile partial sum_i scale_i * tanh(d_i) as a (1,tb)x(tb,1) MXU dot.
    # The "+1" per valid row is a constant (added in the wrapper); the relu of the
    # original module is dropped because tanh(d) in [0,1) keeps both branches >= 0.
    partial = jnp.dot(scale_ref[...], t, preferred_element_type=jnp.float32)  # (1, 1)
    # Lane-dense, unmasked store; wrapper reads column 0.
    out_ref[...] = jnp.broadcast_to(partial, out_ref.shape)


def _loss_antonymy_jax(S2_out, A1_out, labels):
    # Pure-JAX path (reference + small-problem fallback), mirroring the PyTorch loop.
    diff = A1_out.astype(jnp.float32) - S2_out.astype(jnp.float32)
    d = jnp.sqrt(jnp.sum(diff * diff, axis=-1))
    t = jnp.tanh(d)
    err = jnp.where(labels == 2, jax.nn.relu(1.0 - t), jax.nn.relu(1.0 + t))
    return jnp.sum(err)


def loss_antonymy(S2_out, A1_out, labels, *, block_rows=None, force_kernel=False,
                  vmem_limit_bytes=None):
    """S2_out, A1_out: [B, D] float32 or bfloat16; labels: [B] int.

    Returns the scalar f32 loss. bf16 inputs are supported (and recommended for
    large B: the kernel is HBM-bound, so halving input bytes ~halves wall clock).
    """
    B, D = S2_out.shape

    # Tiny problems are dispatch/prologue-dominated; an XLA-fused expression wins.
    if not force_kernel and B * D < 64 * 1024:
        return _loss_antonymy_jax(S2_out, A1_out, labels)

    itemsize = jnp.dtype(S2_out.dtype).itemsize
    d_pad = _round_up(D, 128)                  # lane padding of a (tb, D) VMEM tile
    row_mult = 8 if itemsize >= 4 else 16      # bf16 packs (16, 128) per vreg

    if block_rows is None:
        # Target ~2 MiB per (tb, D) input block ...
        target_block_bytes = 2 * 1024 * 1024
        tb = (target_block_bytes // (d_pad * itemsize)) // row_mult * row_mult
        # ... but keep the double-buffered footprint <= 40 MiB
        # (2 inputs x 2 buffers x (tb, d_pad) + 2 buffers x sublane-padded (8, tb) scale).
        budget_bytes = 40 * 1024 * 1024
        per_row_bytes = 4 * d_pad * itemsize + 2 * 8 * 4
        tb = min(tb, (budget_bytes // per_row_bytes) // row_mult * row_mult)
        tb = max(row_mult, tb)
    else:
        tb = int(block_rows)
        assert tb % row_mult == 0, f"block_rows must be a multiple of {row_mult}"
    tb = max(row_mult, min(tb, _round_up(B, row_mult)))

    num_tiles = pl.cdiv(B, tb)
    B_pad = num_tiles * tb

    if B_pad != B:
        pad = B_pad - B
        S2_out = jnp.pad(S2_out, ((0, pad), (0, 0)))
        A1_out = jnp.pad(A1_out, ((0, pad), (0, 0)))
        labels = jnp.pad(labels, ((0, pad),))

    # Fold labels + ragged-tile mask into one lane-dense float coefficient per row:
    #   scale_i = (-1 if label==2 else +1) * valid_i ; padded rows contribute 0.
    valid = (jnp.arange(B_pad) < B).astype(jnp.float32)
    sign = jnp.where(labels.astype(jnp.int32) == 2, -1.0, 1.0).astype(jnp.float32)
    scale = (sign * valid).reshape(num_tiles, tb)

    if vmem_limit_bytes is None:
        footprint = 4 * tb * d_pad * itemsize + 2 * 8 * _round_up(tb, 128) * 4
        vmem_limit_bytes = int(min(48 * 1024 * 1024,
                                   max(32 * 1024 * 1024, 2 * footprint)))

    partials = pl.pallas_call(
        _loss_antonymy_kernel,
        out_shape=jax.ShapeDtypeStruct((num_tiles, 128), jnp.float32),
        grid=(num_tiles,),
        in_specs=[
            pl.BlockSpec((tb, D), lambda i: (i, 0)),
            pl.BlockSpec((tb, D), lambda i: (i, 0)),
            pl.BlockSpec((1, tb), lambda i: (i, 0)),
        ],
        out_specs=pl.BlockSpec((1, 128), lambda i: (i, 0)),
        compiler_params=pltpu.CompilerParams(
            dimension_semantics=("parallel",),   # independent per-tile partials
            vmem_limit_bytes=vmem_limit_bytes,
        ),
    )(S2_out, A1_out, scale)

    # Constant "+1" per valid row folded out of the kernel; tree-style final sum here.
    return jnp.sum(partials[:, 0]) + jnp.float32(B)


if __name__ == "__main__":
    key = jax.random.PRNGKey(0)
    k1, k2, k3, k4, k5, k6 = jax.random.split(key, 6)

    # Module-scale shapes (batch=8 embeddings of hidden=32); force the Pallas path.
    B, D = 8, 32
    S2 = jax.random.normal(k1, (B, D), dtype=jnp.float32)
    A1 = jax.random.normal(k2, (B, D), dtype=jnp.float32)
    lab = jax.random.randint(k3, (B,), 0, 3, dtype=jnp.int32)   # label==2 -> antonym pair
    loss = loss_antonymy(S2, A1, lab, force_kernel=True)
    jax.block_until_ready(loss)
    ref = _loss_antonymy_jax(S2, A1, lab)
    assert jnp.allclose(loss, ref, atol=1e-4, rtol=1e-4), (loss, ref)

    # Ragged batch + multi-tile grid: exercises padding/masking and per-tile partials.
    B2 = 13
    S2b = jax.random.normal(k4, (B2, D), dtype=jnp.float32)
    A1b = jax.random.normal(k5, (B2, D), dtype=jnp.float32)
    labb = jax.random.randint(k6, (B2,), 0, 3, dtype=jnp.int32)
    loss2 = loss_antonymy(S2b, A1b, labb, block_rows=8, force_kernel=True)
    jax.block_until_ready(loss2)
    ref2 = _loss_antonymy_jax(S2b, A1b, labb)
    assert jnp.allclose(loss2, ref2, atol=1e-4, rtol=1e-4), (loss2, ref2)

    # Larger auto path with bf16 inputs (halved HBM traffic), auto tile sizing.
    k7, k8, k9 = jax.random.split(k6, 3)
    B3, D3 = 1040, 160
    S2c = jax.random.normal(k7, (B3, D3), dtype=jnp.float32).astype(jnp.bfloat16)
    A1c = jax.random.normal(k8, (B3, D3), dtype=jnp.float32).astype(jnp.bfloat16)
    labc = jax.random.randint(k9, (B3,), 0, 3, dtype=jnp.int32)
    loss3 = loss_antonymy(S2c, A1c, labc)
    jax.block_until_ready(loss3)
    ref3 = _loss_antonymy_jax(S2c, A1c, labc)
    assert jnp.allclose(loss3, ref3, atol=0.5, rtol=1e-2), (loss3, ref3)

    # Small-shape auto fallback (pure-JAX path) agrees with the kernel result.
    loss4 = loss_antonymy(S2, A1, lab)
    jax.block_until_ready(loss4)
    assert jnp.allclose(loss4, loss, atol=1e-4, rtol=1e-4), (loss4, loss)

    print("KERNEL_OK")
</pallas_src>

<mosaic_0001>
module attributes {stable_mosaic.version = 11 : i64} {
  func.func @_loss_antonymy_kernel(%arg0: i32, %arg1: memref<8x32xf32, #tpu.memory_space<vmem>>, %arg2: memref<8x32xf32, #tpu.memory_space<vmem>>, %arg3: memref<1x8xf32, #tpu.memory_space<vmem>>, %arg4: memref<1x128xf32, #tpu.memory_space<vmem>>) attributes {dimension_semantics = [#tpu.dimension_semantics<parallel>], iteration_bounds = array<i64: 1>, scalar_prefetch = 0 : i64, scratch_operands = 0 : i64, tpu.core_type = #tpu.core_type<tc>, window_params = [{transform_indices = @transform_0, window_bounds = array<i64: 8, 32>}, {transform_indices = @transform_1, window_bounds = array<i64: 8, 32>}, {transform_indices = @transform_2, window_bounds = array<i64: 1, 8>}, {transform_indices = @transform_3, window_bounds = array<i64: 1, 128>}]} {
    %c0 = arith.constant 0 : index
    %c0_0 = arith.constant 0 : index
    %0 = vector.load %arg2[%c0, %c0_0] : memref<8x32xf32, #tpu.memory_space<vmem>>, vector<8x32xf32>
    %c0_1 = arith.constant 0 : index
    %c0_2 = arith.constant 0 : index
    %1 = vector.load %arg1[%c0_1, %c0_2] : memref<8x32xf32, #tpu.memory_space<vmem>>, vector<8x32xf32>
    %2 = arith.subf %0, %1 : vector<8x32xf32>
    %3 = arith.mulf %2, %2 : vector<8x32xf32>
    %cst = arith.constant dense<0.000000e+00> : vector<8xf32>
    %4 = vector.multi_reduction <add>, %3, %cst [1] : vector<8x32xf32> to vector<8xf32>
    %5 = vector.shape_cast %4 : vector<8xf32> to vector<8x1xf32>
    %6 = math.sqrt %5 : vector<8x1xf32>
    %7 = math.tanh %6 : vector<8x1xf32>
    %c0_3 = arith.constant 0 : index
    %c0_4 = arith.constant 0 : index
    %8 = vector.load %arg3[%c0_3, %c0_4] : memref<1x8xf32, #tpu.memory_space<vmem>>, vector<1x8xf32>
    %cst_5 = arith.constant dense<0.000000e+00> : vector<1x1xf32>
    %9 = tpu.matmul %8, %7, %cst_5 {dimension_numbers = #tpu.dot_dimension_numbers<[1], [0], [0], [1], [0, 0, 1, 1], [], []>} : vector<1x8xf32>, vector<8x1xf32>, vector<1x1xf32> -> vector<1x1xf32>
    %10 = vector.shape_cast %9 : vector<1x1xf32> to vector<1x1xf32>
    %11 = vector.broadcast %10 : vector<1x1xf32> to vector<1x128xf32>
    %c0_6 = arith.constant 0 : index
    %c0_7 = arith.constant 0 : index
    %12 = vector.load %arg4[%c0_6, %c0_7] : memref<1x128xf32, #tpu.memory_space<vmem>>, vector<1x128xf32>
    tpu.vector_store %arg4[%c0_6, %c0_7], %11 {strides = array<i32>} : memref<1x128xf32, #tpu.memory_space<vmem>>, vector<1x128xf32>,
    return
  }
  func.func @transform_0(%arg0: i32) -> (i32, i32) {
    %c0_i32 = arith.constant 0 : i32
    %c0_i32_0 = arith.constant 0 : i32
    return %arg0, %c0_i32 : i32, i32
  }
  func.func @transform_1(%arg0: i32) -> (i32, i32) {
    %c0_i32 = arith.constant 0 : i32
    %c0_i32_0 = arith.constant 0 : i32
    return %arg0, %c0_i32 : i32, i32
  }
  func.func @transform_2(%arg0: i32) -> (i32, i32) {
    %c0_i32 = arith.constant 0 : i32
    %c0_i32_0 = arith.constant 0 : i32
    return %arg0, %c0_i32 : i32, i32
  }
  func.func @transform_3(%arg0: i32) -> (i32, i32) {
    %c0_i32 = arith.constant 0 : i32
    %c0_i32_0 = arith.constant 0 : i32
    return %arg0, %c0_i32 : i32, i32
  }
}

</mosaic_0001>

<llo_original>
// kernel: tpu_custom_call.1
$region0: #{tpu_custom_call.1}
  #allocation0 [shape = 'u32[]', space=smem, size = 0x4, offset = 0x4, fixed_abs, tag = 'smem constant byte address 0x4 - core index']
  #allocation1 [shape = 'u32[144,128]{1,0:T(1,128)}', space=vmem, size = 0x12000, scoped, tag = 'internal scratch']
  %s0 = inlined_call_operand.hbm [shape: f32[8,32], index: 0, kind: input, shape index: {}]
  %s1 = inlined_call_operand.hbm [shape: f32[8,32], index: 1, kind: input, shape index: {}]
  %s2 = inlined_call_operand.vmem [shape: f32[1,8], index: 2, kind: input, shape index: {}]
  %s3 = inlined_call_operand.hbm [shape: f32[1,128], index: 3, kind: output, shape index: {}]
  %s4 = sld [smem:[#allocation0]]
  $region30: #{tpu_custom_call.1} parent=0
    _
  %s6 = ssub.s32 1, %s4
  %s7 = scalar_select 0, %s6, %s4
  $region1: #{tpu_custom_call.1} parent=0
    #allocation2 [shape = 'u8[4096]{0}', space=vmem, size = 0x1000, scoped, tag = 'input window, operand 0, single buffered']
    #allocation3 [shape = 's32[1]{0}', space=sflag, size = 0x4, scoped, tag = 'scoped memory for tpu_custom_call.1']
    #allocation4 [shape = 's32[1]{0}', space=sflag, size = 0x4, scoped, tag = 'scoped memory for tpu_custom_call.1']
    #allocation5 [shape = 'u8[4096]{0}', space=vmem, size = 0x1000, scoped, tag = 'input window, operand 1, single buffered']
    #allocation6 [shape = 's32[1]{0}', space=sflag, size = 0x4, scoped, tag = 'scoped memory for tpu_custom_call.1']
    #allocation7 [shape = 'u8[512]{0}', space=vmem, size = 0x400, scoped, tag = 'output window, operand 0, single buffered']
    %8 = vsyncpa [#allocation3], 0
    %9 = vsyncpa [#allocation6], 0
    %10 = vsyncpa [#allocation4], 0
    // Predicated region
    $region2: #{tpu_custom_call.1} parent=1 // pred_check
      _
    $region3: #{tpu_custom_call.1} parent=1 // pred_check_branch
      %12 = sbr.rel (0) target = $region5
    $region4: #{tpu_custom_call.1} parent=1 // pred_region
      %s14 = ssub.s32 128, 128
      %15 = vsyncadd [#allocation3], %s14
      %s17 = sshll.u32 [#allocation2], 4
      %s18 = int_to_ptr.vmem [resolvable:$true] %s17
      %20 = dma.hbm_to_vmem [thread:$0]  %s0, 128, %s18, [#allocation3]
    $region5: #{tpu_custom_call.1} parent=1 // pred_fallthru
      _
    // Predicated region
    $region6: #{tpu_custom_call.1} parent=1 // pred_check
      _
    $region7: #{tpu_custom_call.1} parent=1 // pred_check_branch
      %22 = sbr.rel (0) target = $region9
    $region8: #{tpu_custom_call.1} parent=1 // pred_region
      %s24 = ssub.s32 128, 128
      %25 = vsyncadd [#allocation6], %s24
      %s27 = sshll.u32 [#allocation5], 4
      %s28 = int_to_ptr.vmem [resolvable:$true] %s27
      %30 = dma.hbm_to_vmem [thread:$0]  %s1, 128, %s28, [#allocation6]
    $region9: #{tpu_custom_call.1} parent=1 // pred_fallthru
      _
    // Predicated region
    $region10: #{tpu_custom_call.1} parent=1 // pred_check
      _
    $region11: #{tpu_custom_call.1} parent=1 // pred_check_branch
      %32 = sbr.rel (0) target = $region13
    $region12: #{tpu_custom_call.1} parent=1 // pred_region
      _
    $region13: #{tpu_custom_call.1} parent=1 // pred_fallthru
      _
    // Predicated region
    $region14: #{tpu_custom_call.1} parent=1 // pred_check
      _
    $region15: #{tpu_custom_call.1} parent=1 // pred_check_branch
      %34 = sbr.rel (0) target = $region17
    $region16: #{tpu_custom_call.1} parent=1 // pred_region
      %35 = dma.done [#allocation3], 128
    $region17: #{tpu_custom_call.1} parent=1 // pred_fallthru
      _
    // Predicated region
    $region18: #{tpu_custom_call.1} parent=1 // pred_check
      _
    $region19: #{tpu_custom_call.1} parent=1 // pred_check_branch
      %37 = sbr.rel (0) target = $region21
    $region20: #{tpu_custom_call.1} parent=1 // pred_region
      %38 = dma.done [#allocation6], 128
    $region21: #{tpu_custom_call.1} parent=1 // pred_fallthru
      _
    %v39 = vld [vmem:[#allocation5] sm:$0xff]
    %v40 = vld [vmem:[#allocation2] sm:$0xff]
    %v41 = vsub.f32 %v39, %v40
    %v42 = vmul.f32 %v41, %v41
    %vm43 = vcmask 261120
    %v44 = vsel %vm43, %v42, 0.0
    %45 = vadd.xlane.f32.xlu0 %v44
    %v46 = vpop.xlane.xlu0 %45
    %v47 = vrsqrt.pop %v46
    %v48 = vmul.f32 %v46, %v47
    %vm49 = vcmp.eq.f32.partialorder %v46, inf
    %v50 = vsel %vm49, %v46, %v48
    %vm51 = vcmp.eq.f32.partialorder %v46, 0.0
    %v52 = vand.u32 %v46, 2147483648
    %v53 = vsel %vm51, %v52, %v50
    %v54 = vtanh.pop %v53
    %v55 = vld [vmem:[%s2] sm:$0x1]
    %vm56 = vcmask 64512
    %v58 = vsel %vm56, %v55, 0
    %60 = vmatprep.subr.mxu0 0.0
    %61 = vmatpush1.msra.mxu0 %v54
    %62 = vmatprep.subr.mxu0 0.0
    %63 = vmatpush1.msra.mxu0 0.0
    %64 = vmatprep.subr.mxu0 0.0
    %65 = vmatpush1.msra.mxu0 0.0
    %66 = vmatprep.subr.mxu0 0.0
    %67 = vmatpush1.msra.mxu0 0.0
    %68 = vmatprep.subr.mxu0 0.0
    %69 = vmatpush1.msra.mxu0 0.0
    %70 = vmatprep.subr.mxu0 0.0
    %71 = vmatpush1.msra.mxu0 0.0
    %72 = vmatprep.subr.mxu0 0.0
    %73 = vmatpush1.msra.mxu0 0.0
    %74 = vmatprep.subr.mxu0 0.0
    %75 = vmatpush1.msra.mxu0 0.0
    %76 = vmatprep.subr.mxu0 0.0
    %77 = vmatpush1.msra.mxu0 0.0
    %78 = vmatprep.subr.mxu0 0.0
    %79 = vmatpush1.msra.mxu0 0.0
    %80 = vmatprep.subr.mxu0 0.0
    %81 = vmatpush1.msra.mxu0 0.0
    %82 = vmatprep.subr.mxu0 0.0
    %83 = vmatpush1.msra.mxu0 0.0
    %84 = vmatprep.subr.mxu0 0.0
    %85 = vmatpush1.msra.mxu0 0.0
    %86 = vmatprep.subr.mxu0 0.0
    %87 = vmatpush1.msra.mxu0 0.0
    %88 = vmatprep.subr.mxu0 0.0
    %89 = vmatpush1.msra.mxu0 0.0
    %90 = vmatprep.subr.mxu0 0.0
    %91 = vmatpush1.msra.mxu0 0.0
    %92 = vmatprep.subr.mxu0 0.0
    %93 = vmatpush1.msra.mxu0 0.0
    %94 = vmatprep.subr.mxu0 0.0
    %95 = vmatpush1.msra.mxu0 0.0
    %96 = vmatprep.subr.mxu0 0.0
    %97 = vmatpush1.msra.mxu0 0.0
    %98 = vmatprep.subr.mxu0 0.0
    %99 = vmatpush1.msra.mxu0 0.0
    %100 = vmatprep.subr.mxu0 0.0
    %101 = vmatpush1.msra.mxu0 0.0
    %102 = vmatprep.subr.mxu0 0.0
    %103 = vmatpush1.msra.mxu0 0.0
    %104 = vmatprep.subr.mxu0 0.0
    %105 = vmatpush1.msra.mxu0 0.0
    %106 = vmatprep.subr.mxu0 0.0
    %107 = vmatpush1.msra.mxu0 0.0
    %108 = vmatprep.subr.mxu0 0.0
    %109 = vmatpush1.msra.mxu0 0.0
    %110 = vmatprep.subr.mxu0 0.0
    %111 = vmatpush1.msra.mxu0 0.0
    %112 = vmatprep.subr.mxu0 0.0
    %113 = vmatpush1.msra.mxu0 0.0
    %114 = vmatprep.subr.mxu0 0.0
    %115 = vmatpush1.msra.mxu0 0.0
    %116 = vmatprep.subr.mxu0 0.0
    %117 = vmatpush1.msra.mxu0 0.0
    %118 = vmatprep.subr.mxu0 0.0
    %119 = vmatpush1.msra.mxu0 0.0
    %120 = vmatprep.subr.mxu0 0.0
    %121 = vmatpush1.msra.mxu0 0.0
    %122 = vmatprep.subr.mxu0 0.0
    %123 = vmatpush1.msra.mxu0 0.0
    %124 = vmatprep.mubr.f32.mxu0 0.0
    %125 = vmatmul.mubr.f32.gmra.mrb[0].mxu0 %v58
    %v126 = vpop.f32.mrb[0].mxu0
    %v127 = vadd.f32 0.0, %v126
    %v128 = vpop.f32.mrb[0].mxu0
    %129 = vdwg.mxu0
    %131 = vset.pattern.permute.xlu0 0
    %132 = vperm.xlu0 %131, %v127
    %v133 = vpop.permute.xlu0 %132
    %135 = vst [vmem:[#allocation7] sm:$0x1] %v133
    // Predicated region
    $region22: #{tpu_custom_call.1} parent=1 // pred_check
      _
    $region23: #{tpu_custom_call.1} parent=1 // pred_check_branch
      %137 = sbr.rel (0) target = $region25
    $region24: #{tpu_custom_call.1} parent=1 // pred_region
      %s139 = ssub.s32 16, 16
      %140 = vsyncadd [#allocation4], %s139
      %s142 = sshll.u32 [#allocation7], 4
      %s143 = int_to_ptr.vmem [resolvable:$true] %s142
      %145 = dma.vmem_to_hbm [thread:$0]  %s143, 16, %s3, [#allocation4]
    $region25: #{tpu_custom_call.1} parent=1 // pred_fallthru
      _
    // Predicated region
    $region26: #{tpu_custom_call.1} parent=1 // pred_check
      _
    $region27: #{tpu_custom_call.1} parent=1 // pred_check_branch
      %147 = sbr.rel (0) target = $region29
    $region28: #{tpu_custom_call.1} parent=1 // pred_region
      %148 = dma.done [#allocation4], 16
    $region29: #{tpu_custom_call.1} parent=1 // pred_fallthru
      _
    %149 = vsyncpa [#allocation3], 1
    %150 = vsyncpa [#allocation6], 1
    %151 = vsyncpa [#allocation4], 1

</llo_original>
